<compile_context>
chip_gen: v6e
topology: v6e:2x2x1
jax: 0.10.0
libtpu: 0.0.40
codegen_flags: <defaults>
</compile_context>

<pallas_src>
import jax
import jax.numpy as jnp
from jax.experimental import pallas as pl
from jax.experimental.pallas import tpu as pltpu

NEG_INF = -1e30  # exp(NEG_INF - m) underflows to exactly 0.0, matching -inf


def _round_up(x, m):
    return (x + m - 1) // m * m


def actor_ppo_kernel(x_ref, acc_ref, mask_ref,
                     w1x_ref, w1a_ref, b1_ref, w2_ref, b2_ref, w3_ref, b3_ref,
                     prob_ref):
    """Fused Linear/ReLU x2 -> Linear -> mask -> softmax.

    x_ref:    (TB, F)   raw features (f32, cast to bf16 in-kernel)
    acc_ref:  (TB, A)   account features
    mask_ref: (TB, NA)  action mask, 0 = illegal
    w1x/w1a:  split W1 (replaces the torch.cat([x, account], 1) @ W1)
    prob_ref: (TB, NA)  action probabilities
    """
    xb = x_ref[...].astype(jnp.bfloat16)
    ab = acc_ref[...].astype(jnp.bfloat16)

    # Layer 1 + ReLU  (bf16 MXU matmuls, f32 accumulation; cat replaced by split dots)
    h = (jnp.dot(xb, w1x_ref[...], preferred_element_type=jnp.float32)
         + jnp.dot(ab, w1a_ref[...], preferred_element_type=jnp.float32)
         + b1_ref[...])
    h = jnp.maximum(h, 0.0).astype(jnp.bfloat16)

    # Layer 2 + ReLU
    h = jnp.dot(h, w2_ref[...], preferred_element_type=jnp.float32) + b2_ref[...]
    h = jnp.maximum(h, 0.0).astype(jnp.bfloat16)

    # Output layer (kept at native n_actions width — f32 logits)
    logits = jnp.dot(h, w3_ref[...], preferred_element_type=jnp.float32) + b3_ref[...]

    # output[action_mask == 0] = -inf
    logits = jnp.where(mask_ref[...] == 0.0, NEG_INF, logits)

    # Numerically stable softmax over the action axis (reciprocal-multiply).
    m = jnp.max(logits, axis=-1, keepdims=True)
    e = jnp.exp(logits - m)
    s = jnp.sum(e, axis=-1, keepdims=True)
    prob_ref[...] = (e * pl.reciprocal(s, approx=False)).astype(prob_ref.dtype)


def prepare_actor_params(params, account_feats):
    """One-time weight preprocessing (hoisted out of the per-call hot path).

    params: (W1 (F+A, H1), b1 (H1,), W2 (H1, H2), b2 (H2,), W3 (H2, NA), b3 (NA,))
    Returns kernel-ready tuple (W1x, W1a, b1, W2, b2, W3, b3):
      * W1 split into the x-part and account-part (removes the runtime concat),
      * weights cast to bf16 (MXU full-rate path, half the resident VMEM),
      * biases reshaped to (1, H) and kept in f32 (added to the f32 accumulators).
    """
    W1, b1, W2, b2, W3, b3 = params
    A = account_feats
    F = W1.shape[0] - A
    W1x = jnp.asarray(W1[:F, :], dtype=jnp.bfloat16)
    W1a = jnp.asarray(W1[F:, :], dtype=jnp.bfloat16)
    W2b = jnp.asarray(W2, dtype=jnp.bfloat16)
    W3b = jnp.asarray(W3, dtype=jnp.bfloat16)
    b1r = jnp.asarray(b1, dtype=jnp.float32).reshape(1, -1)
    b2r = jnp.asarray(b2, dtype=jnp.float32).reshape(1, -1)
    b3r = jnp.asarray(b3, dtype=jnp.float32).reshape(1, -1)
    return (W1x, W1a, b1r, W2b, b2r, W3b, b3r)


def actor_ppo_forward(x, current_account, action_mask, prepped, *, block_b=1024):
    """ActorPPO discrete forward (raw-data path). Returns action probs (B, n_actions).

    x:               (B, F)   raw features
    current_account: (B, A)   account features
    action_mask:     (B, NA)  0/1 legal-action mask
    prepped:         output of prepare_actor_params (called once at init)
    """
    W1x, W1a, b1, W2, b2, W3, b3 = prepped
    B, F = x.shape
    A = current_account.shape[1]
    H1, H2 = W1x.shape[1], W2.shape[1]
    NA = W3.shape[1]

    # Batch tiling: biggest tile the batch allows (fewer grid steps, less fixed
    # overhead).  If there is enough work, keep >= 2 steps so v7x's two
    # TensorCores both get a "parallel" batch tile (no-op on v5e/v6e).
    rows8 = _round_up(B, 8)
    TB = min(block_b, rows8)
    if rows8 >= 16 and TB >= rows8:
        TB = _round_up((rows8 + 1) // 2, 8)
    B_pad = _round_up(B, TB)

    xf = x.astype(jnp.float32)
    af = current_account.astype(jnp.float32)
    mf = action_mask.astype(jnp.float32)
    if B_pad != B:
        pad = B_pad - B
        # Padded rows get an all-zero mask -> uniform probs; sliced off below.
        xf = jnp.pad(xf, ((0, pad), (0, 0)))
        af = jnp.pad(af, ((0, pad), (0, 0)))
        mf = jnp.pad(mf, ((0, pad), (0, 0)))

    row = lambda i: (i, 0)      # batch-tiled operands
    const = lambda i: (0, 0)    # weights: same block every step -> stay resident in VMEM

    weight_bytes = (F * H1 + A * H1 + H1 * H2 + H2 * NA) * 2 + (H1 + H2 + NA) * 4
    cost = pl.CostEstimate(
        flops=2 * B_pad * (F * H1 + A * H1 + H1 * H2 + H2 * NA),
        transcendentals=B_pad * NA,
        bytes_accessed=B_pad * (F + A + 2 * NA) * 4 + weight_bytes,
    )

    probs = pl.pallas_call(
        actor_ppo_kernel,
        out_shape=jax.ShapeDtypeStruct((B_pad, NA), jnp.float32),
        grid_spec=pltpu.PrefetchScalarGridSpec(
            num_scalar_prefetch=0,
            grid=(B_pad // TB,),
            in_specs=[
                pl.BlockSpec((TB, F), row),       # x
                pl.BlockSpec((TB, A), row),       # current_account
                pl.BlockSpec((TB, NA), row),      # action mask (native width)
                pl.BlockSpec((F, H1), const),     # W1 (x part)
                pl.BlockSpec((A, H1), const),     # W1 (account part)
                pl.BlockSpec((1, H1), const),     # b1
                pl.BlockSpec((H1, H2), const),    # W2
                pl.BlockSpec((1, H2), const),     # b2
                pl.BlockSpec((H2, NA), const),    # W3
                pl.BlockSpec((1, NA), const),     # b3
            ],
            out_specs=pl.BlockSpec((TB, NA), row),
        ),
        compiler_params=pltpu.CompilerParams(
            dimension_semantics=("parallel",)),    # shard batch tiles across v7x cores
        cost_estimate=cost,
    )(xf, af, mf, W1x, W1a, b1, W2, b2, W3, b3)

    if B_pad != B:
        probs = probs[:B]
    return probs


def actor_ppo_ref(x, current_account, action_mask, params):
    """Pure-JAX f32 reference mirroring the PyTorch forward (discrete, raw-data path)."""
    W1, b1, W2, b2, W3, b3 = params
    hp = jax.lax.Precision.HIGHEST
    out = jnp.concatenate([x, current_account], axis=1)
    h = jax.nn.relu(jnp.dot(out, W1, precision=hp) + b1)
    h = jax.nn.relu(jnp.dot(h, W2, precision=hp) + b2)
    logits = jnp.dot(h, W3, precision=hp) + b3
    logits = jnp.where(action_mask == 0, -jnp.inf, logits)
    return jax.nn.softmax(logits, axis=-1)


if __name__ == "__main__":
    key = jax.random.PRNGKey(0)
    ks = jax.random.split(key, 8)

    # Small shapes consistent with the module: input_shape[0]=29 raw features,
    # account_feats=3 -> con_out_size=32; actor MLP 32 -> 512 -> 256 -> n_actions=3.
    B, F_IN, ACC = 8, 29, 3
    H1, H2, NA = 512, 256, 3

    x = jax.random.normal(ks[0], (B, F_IN), dtype=jnp.float32)
    account = jax.random.normal(ks[1], (B, ACC), dtype=jnp.float32)
    action_mask = (jax.random.uniform(ks[2], (B, NA)) > 0.3).astype(jnp.float32)
    action_mask = action_mask.at[:, 0].set(1.0)      # at least one legal action per row

    W1 = jax.random.normal(ks[3], (F_IN + ACC, H1), dtype=jnp.float32) * 0.05
    b1 = jax.random.normal(ks[4], (H1,), dtype=jnp.float32) * 0.05
    W2 = jax.random.normal(ks[5], (H1, H2), dtype=jnp.float32) * 0.05
    b2 = jax.random.normal(ks[6], (H2,), dtype=jnp.float32) * 0.05
    W3 = jax.random.normal(ks[7], (H2, NA), dtype=jnp.float32) * 0.05
    b3 = jnp.zeros((NA,), dtype=jnp.float32)
    params = (W1, b1, W2, b2, W3, b3)

    # One-time weight preprocessing (out of the per-call hot path).
    prepped = prepare_actor_params(params, account_feats=ACC)

    probs = actor_ppo_forward(x, account, action_mask, prepped)
    probs = jax.block_until_ready(probs)

    ref = actor_ppo_ref(x, account, action_mask, params)
    assert probs.shape == (B, NA)
    # bf16 MXU matmuls (f32 accumulation) match the pure-f32 reference to a few 1e-3.
    assert jnp.allclose(probs, ref, atol=5e-3, rtol=5e-3), "mismatch vs reference"
    assert jnp.allclose(jnp.sum(probs, axis=-1), 1.0, atol=1e-5), "probs must sum to 1"
    assert bool(jnp.all(jnp.where(action_mask == 0, probs, 0.0) == 0.0)), \
        "masked actions must have zero probability"

    print("KERNEL_OK")
</pallas_src>

<mosaic_0001>
module attributes {stable_mosaic.version = 11 : i64} {
  func.func @actor_ppo_kernel(%arg0: i32, %arg1: memref<8x29xf32, #tpu.memory_space<vmem>>, %arg2: memref<8x3xf32, #tpu.memory_space<vmem>>, %arg3: memref<8x3xf32, #tpu.memory_space<vmem>>, %arg4: memref<29x512xbf16, #tpu.memory_space<vmem>>, %arg5: memref<3x512xbf16, #tpu.memory_space<vmem>>, %arg6: memref<1x512xf32, #tpu.memory_space<vmem>>, %arg7: memref<512x256xbf16, #tpu.memory_space<vmem>>, %arg8: memref<1x256xf32, #tpu.memory_space<vmem>>, %arg9: memref<256x3xbf16, #tpu.memory_space<vmem>>, %arg10: memref<1x3xf32, #tpu.memory_space<vmem>>, %arg11: memref<8x3xf32, #tpu.memory_space<vmem>>) attributes {dimension_semantics = [#tpu.dimension_semantics<parallel>], iteration_bounds = array<i64: 1>, scalar_prefetch = 0 : i64, scratch_operands = 0 : i64, tpu.core_type = #tpu.core_type<tc>, window_params = [{transform_indices = @transform_0, window_bounds = array<i64: 8, 29>}, {transform_indices = @transform_1, window_bounds = array<i64: 8, 3>}, {transform_indices = @transform_2, window_bounds = array<i64: 8, 3>}, {pipeline_mode = #tpu.pipeline_mode<synchronous>, transform_indices = @transform_3, window_bounds = array<i64: 29, 512>}, {pipeline_mode = #tpu.pipeline_mode<synchronous>, transform_indices = @transform_4, window_bounds = array<i64: 3, 512>}, {pipeline_mode = #tpu.pipeline_mode<synchronous>, transform_indices = @transform_5, window_bounds = array<i64: 1, 512>}, {pipeline_mode = #tpu.pipeline_mode<synchronous>, transform_indices = @transform_6, window_bounds = array<i64: 512, 256>}, {pipeline_mode = #tpu.pipeline_mode<synchronous>, transform_indices = @transform_7, window_bounds = array<i64: 1, 256>}, {pipeline_mode = #tpu.pipeline_mode<synchronous>, transform_indices = @transform_8, window_bounds = array<i64: 256, 3>}, {pipeline_mode = #tpu.pipeline_mode<synchronous>, transform_indices = @transform_9, window_bounds = array<i64: 1, 3>}, {transform_indices = @transform_10, window_bounds = array<i64: 8, 3>}]} {
    %c0 = arith.constant 0 : index
    %c0_0 = arith.constant 0 : index
    %0 = vector.load %arg1[%c0, %c0_0] : memref<8x29xf32, #tpu.memory_space<vmem>>, vector<8x29xf32>
    %1 = arith.truncf %0 : vector<8x29xf32> to vector<8x29xbf16>
    %c0_1 = arith.constant 0 : index
    %c0_2 = arith.constant 0 : index
    %2 = vector.load %arg2[%c0_1, %c0_2] : memref<8x3xf32, #tpu.memory_space<vmem>>, vector<8x3xf32>
    %3 = arith.truncf %2 : vector<8x3xf32> to vector<8x3xbf16>
    %c0_3 = arith.constant 0 : index
    %c0_4 = arith.constant 0 : index
    %4 = vector.load %arg4[%c0_3, %c0_4] : memref<29x512xbf16, #tpu.memory_space<vmem>>, vector<29x512xbf16>
    %cst = arith.constant dense<0.000000e+00> : vector<8x512xf32>
    %5 = tpu.matmul %1, %4, %cst {dimension_numbers = #tpu.dot_dimension_numbers<[1], [0], [0], [1], [0, 0, 1, 1], [], []>} : vector<8x29xbf16>, vector<29x512xbf16>, vector<8x512xf32> -> vector<8x512xf32>
    %c0_5 = arith.constant 0 : index
    %c0_6 = arith.constant 0 : index
    %6 = vector.load %arg5[%c0_5, %c0_6] : memref<3x512xbf16, #tpu.memory_space<vmem>>, vector<3x512xbf16>
    %cst_7 = arith.constant dense<0.000000e+00> : vector<8x512xf32>
    %7 = tpu.matmul %3, %6, %cst_7 {dimension_numbers = #tpu.dot_dimension_numbers<[1], [0], [0], [1], [0, 0, 1, 1], [], []>} : vector<8x3xbf16>, vector<3x512xbf16>, vector<8x512xf32> -> vector<8x512xf32>
    %8 = arith.addf %5, %7 : vector<8x512xf32>
    %c0_8 = arith.constant 0 : index
    %c0_9 = arith.constant 0 : index
    %9 = vector.load %arg6[%c0_8, %c0_9] : memref<1x512xf32, #tpu.memory_space<vmem>>, vector<1x512xf32>
    %10 = vector.broadcast %9 : vector<1x512xf32> to vector<8x512xf32>
    %11 = arith.addf %8, %10 : vector<8x512xf32>
    %cst_10 = arith.constant 0.000000e+00 : f32
    %12 = vector.broadcast %cst_10 : f32 to vector<8x512xf32>
    %13 = arith.maximumf %11, %12 : vector<8x512xf32>
    %14 = arith.truncf %13 : vector<8x512xf32> to vector<8x512xbf16>
    %c0_11 = arith.constant 0 : index
    %c0_12 = arith.constant 0 : index
    %15 = vector.load %arg7[%c0_11, %c0_12] : memref<512x256xbf16, #tpu.memory_space<vmem>>, vector<512x256xbf16>
    %cst_13 = arith.constant dense<0.000000e+00> : vector<8x256xf32>
    %16 = tpu.matmul %14, %15, %cst_13 {dimension_numbers = #tpu.dot_dimension_numbers<[1], [0], [0], [1], [0, 0, 1, 1], [], []>} : vector<8x512xbf16>, vector<512x256xbf16>, vector<8x256xf32> -> vector<8x256xf32>
    %c0_14 = arith.constant 0 : index
    %c0_15 = arith.constant 0 : index
    %17 = vector.load %arg8[%c0_14, %c0_15] : memref<1x256xf32, #tpu.memory_space<vmem>>, vector<1x256xf32>
    %18 = vector.broadcast %17 : vector<1x256xf32> to vector<8x256xf32>
    %19 = arith.addf %16, %18 : vector<8x256xf32>
    %cst_16 = arith.constant 0.000000e+00 : f32
    %20 = vector.broadcast %cst_16 : f32 to vector<8x256xf32>
    %21 = arith.maximumf %19, %20 : vector<8x256xf32>
    %22 = arith.truncf %21 : vector<8x256xf32> to vector<8x256xbf16>
    %c0_17 = arith.constant 0 : index
    %c0_18 = arith.constant 0 : index
    %23 = vector.load %arg9[%c0_17, %c0_18] : memref<256x3xbf16, #tpu.memory_space<vmem>>, vector<256x3xbf16>
    %cst_19 = arith.constant dense<0.000000e+00> : vector<8x3xf32>
    %24 = tpu.matmul %22, %23, %cst_19 {dimension_numbers = #tpu.dot_dimension_numbers<[1], [0], [0], [1], [0, 0, 1, 1], [], []>} : vector<8x256xbf16>, vector<256x3xbf16>, vector<8x3xf32> -> vector<8x3xf32>
    %c0_20 = arith.constant 0 : index
    %c0_21 = arith.constant 0 : index
    %25 = vector.load %arg10[%c0_20, %c0_21] : memref<1x3xf32, #tpu.memory_space<vmem>>, vector<1x3xf32>
    %26 = vector.broadcast %25 : vector<1x3xf32> to vector<8x3xf32>
    %27 = arith.addf %24, %26 : vector<8x3xf32>
    %c0_22 = arith.constant 0 : index
    %c0_23 = arith.constant 0 : index
    %28 = vector.load %arg3[%c0_22, %c0_23] : memref<8x3xf32, #tpu.memory_space<vmem>>, vector<8x3xf32>
    %cst_24 = arith.constant 0.000000e+00 : f32
    %29 = vector.broadcast %cst_24 : f32 to vector<8x3xf32>
    %30 = arith.cmpf oeq, %28, %29 : vector<8x3xf32>
    %cst_25 = arith.constant -1.000000e+30 : f32
    %31 = vector.broadcast %cst_25 : f32 to vector<8x3xf32>
    %32 = arith.select %30, %31, %27 : vector<8x3xi1>, vector<8x3xf32>
    %cst_26 = arith.constant dense<0xFF800000> : vector<8xf32>
    %33 = vector.multi_reduction <maximumf>, %32, %cst_26 [1] : vector<8x3xf32> to vector<8xf32>
    %34 = vector.shape_cast %33 : vector<8xf32> to vector<8x1xf32>
    %35 = vector.broadcast %34 : vector<8x1xf32> to vector<8x3xf32>
    %36 = arith.subf %32, %35 : vector<8x3xf32>
    %37 = math.exp %36 : vector<8x3xf32>
    %cst_27 = arith.constant dense<0.000000e+00> : vector<8xf32>
    %38 = vector.multi_reduction <add>, %37, %cst_27 [1] : vector<8x3xf32> to vector<8xf32>
    %39 = vector.shape_cast %38 : vector<8xf32> to vector<8x1xf32>
    %40 = tpu.reciprocal %39 : vector<8x1xf32> -> vector<8x1xf32>
    %41 = vector.broadcast %40 : vector<8x1xf32> to vector<8x3xf32>
    %42 = arith.mulf %37, %41 : vector<8x3xf32>
    %c0_28 = arith.constant 0 : index
    %c0_29 = arith.constant 0 : index
    %43 = vector.load %arg11[%c0_28, %c0_29] : memref<8x3xf32, #tpu.memory_space<vmem>>, vector<8x3xf32>
    tpu.vector_store %arg11[%c0_28, %c0_29], %42 {strides = array<i32>} : memref<8x3xf32, #tpu.memory_space<vmem>>, vector<8x3xf32>,
    return
  }
  func.func @transform_0(%arg0: i32) -> (i32, i32) {
    %c0_i32 = arith.constant 0 : i32
    %c0_i32_0 = arith.constant 0 : i32
    return %arg0, %c0_i32 : i32, i32
  }
  func.func @transform_1(%arg0: i32) -> (i32, i32) {
    %c0_i32 = arith.constant 0 : i32
    %c0_i32_0 = arith.constant 0 : i32
    return %arg0, %c0_i32 : i32, i32
  }
  func.func @transform_2(%arg0: i32) -> (i32, i32) {
    %c0_i32 = arith.constant 0 : i32
    %c0_i32_0 = arith.constant 0 : i32
    return %arg0, %c0_i32 : i32, i32
  }
  func.func @transform_3(%arg0: i32) -> (i32, i32) {
    %c0_i32 = arith.constant 0 : i32
    %c0_i32_0 = arith.constant 0 : i32
    %c0_i32_1 = arith.constant 0 : i32
    return %c0_i32, %c0_i32_0 : i32, i32
  }
  func.func @transform_4(%arg0: i32) -> (i32, i32) {
    %c0_i32 = arith.constant 0 : i32
    %c0_i32_0 = arith.constant 0 : i32
    %c0_i32_1 = arith.constant 0 : i32
    return %c0_i32, %c0_i32_0 : i32, i32
  }
  func.func @transform_5(%arg0: i32) -> (i32, i32) {
    %c0_i32 = arith.constant 0 : i32
    %c0_i32_0 = arith.constant 0 : i32
    %c0_i32_1 = arith.constant 0 : i32
    return %c0_i32, %c0_i32_0 : i32, i32
  }
  func.func @transform_6(%arg0: i32) -> (i32, i32) {
    %c0_i32 = arith.constant 0 : i32
    %c0_i32_0 = arith.constant 0 : i32
    %c0_i32_1 = arith.constant 0 : i32
    return %c0_i32, %c0_i32_0 : i32, i32
  }
  func.func @transform_7(%arg0: i32) -> (i32, i32) {
    %c0_i32 = arith.constant 0 : i32
    %c0_i32_0 = arith.constant 0 : i32
    %c0_i32_1 = arith.constant 0 : i32
    return %c0_i32, %c0_i32_0 : i32, i32
  }
  func.func @transform_8(%arg0: i32) -> (i32, i32) {
    %c0_i32 = arith.constant 0 : i32
    %c0_i32_0 = arith.constant 0 : i32
    %c0_i32_1 = arith.constant 0 : i32
    return %c0_i32, %c0_i32_0 : i32, i32
  }
  func.func @transform_9(%arg0: i32) -> (i32, i32) {
    %c0_i32 = arith.constant 0 : i32
    %c0_i32_0 = arith.constant 0 : i32
    %c0_i32_1 = arith.constant 0 : i32
    return %c0_i32, %c0_i32_0 : i32, i32
  }
  func.func @transform_10(%arg0: i32) -> (i32, i32) {
    %c0_i32 = arith.constant 0 : i32
    %c0_i32_0 = arith.constant 0 : i32
    return %arg0, %c0_i32 : i32, i32
  }
}

</mosaic_0001>

<llo_original>
// kernel: tpu_custom_call.1
$region0: #{tpu_custom_call.1}
  #allocation0 [shape = 'u32[]', space=smem, size = 0x4, offset = 0x4, fixed_abs, tag = 'smem constant byte address 0x4 - core index']
  #allocation1 [shape = 'u32[144,128]{1,0:T(1,128)}', space=vmem, size = 0x12000, scoped, tag = 'internal scratch']
  %s0 = inlined_call_operand.vmem [shape: f32[8,29], index: 0, kind: input, shape index: {}]
  %s1 = inlined_call_operand.vmem [shape: f32[8,3], index: 1, kind: input, shape index: {}]
  %s2 = inlined_call_operand.vmem [shape: f32[8,3], index: 2, kind: input, shape index: {}]
  %s3 = inlined_call_operand.vmem [shape: bf16[29,512], index: 3, kind: input, shape index: {}]
  %s4 = inlined_call_operand.vmem [shape: bf16[3,512], index: 4, kind: input, shape index: {}]
  %s5 = inlined_call_operand.vmem [shape: f32[1,512], index: 5, kind: input, shape index: {}]
  %s6 = inlined_call_operand.hbm [shape: bf16[512,256], index: 6, kind: input, shape index: {}]
  %s7 = inlined_call_operand.vmem [shape: f32[1,256], index: 7, kind: input, shape index: {}]
  %s8 = inlined_call_operand.vmem [shape: bf16[256,3], index: 8, kind: input, shape index: {}]
  %s9 = inlined_call_operand.vmem [shape: f32[1,3], index: 9, kind: input, shape index: {}]
  %s10 = inlined_call_operand.vmem [shape: f32[8,3], index: 10, kind: output, shape index: {}]
  %s11 = sld [smem:[#allocation0]]
  $region54: #{tpu_custom_call.1} parent=0
    _
  %s13 = ssub.s32 1, %s11
  %s14 = scalar_select 0, %s13, %s11
  $region1: #{tpu_custom_call.1} parent=0
    #allocation2 [shape = 'u8[262144]{0}', space=vmem, size = 0x40000, scoped, tag = 'input window, operand 6, single buffered']
    #allocation3 [shape = 's32[1]{0}', space=sflag, size = 0x4, scoped, tag = 'scoped memory for tpu_custom_call.1']
    %15 = vsyncpa [#allocation3], 0
    // Predicated region
    $region2: #{tpu_custom_call.1} parent=1 // pred_check
      _
    $region3: #{tpu_custom_call.1} parent=1 // pred_check_branch
      %17 = sbr.rel (0) target = $region5
    $region4: #{tpu_custom_call.1} parent=1 // pred_region
      _
    $region5: #{tpu_custom_call.1} parent=1 // pred_fallthru
      _
    // Predicated region
    $region6: #{tpu_custom_call.1} parent=1 // pred_check
      _
    $region7: #{tpu_custom_call.1} parent=1 // pred_check_branch
      %19 = sbr.rel (0) target = $region9
    $region8: #{tpu_custom_call.1} parent=1 // pred_region
      _
    $region9: #{tpu_custom_call.1} parent=1 // pred_fallthru
      _
    // Predicated region
    $region10: #{tpu_custom_call.1} parent=1 // pred_check
      _
    $region11: #{tpu_custom_call.1} parent=1 // pred_check_branch
      %21 = sbr.rel (0) target = $region13
    $region12: #{tpu_custom_call.1} parent=1 // pred_region
      _
    $region13: #{tpu_custom_call.1} parent=1 // pred_fallthru
      _
    // Predicated region
    $region14: #{tpu_custom_call.1} parent=1 // pred_check
      _
    $region15: #{tpu_custom_call.1} parent=1 // pred_check_branch
      %23 = sbr.rel (0) target = $region17
    $region16: #{tpu_custom_call.1} parent=1 // pred_region
      _
    $region17: #{tpu_custom_call.1} parent=1 // pred_fallthru
      _
    // Predicated region
    $region18: #{tpu_custom_call.1} parent=1 // pred_check
      _
    $region19: #{tpu_custom_call.1} parent=1 // pred_check_branch
      %25 = sbr.rel (0) target = $region21
    $region20: #{tpu_custom_call.1} parent=1 // pred_region
      _
    $region21: #{tpu_custom_call.1} parent=1 // pred_fallthru
      _
    // Predicated region
    $region22: #{tpu_custom_call.1} parent=1 // pred_check
      _
    $region23: #{tpu_custom_call.1} parent=1 // pred_check_branch
      %27 = sbr.rel (0) target = $region25
    $region24: #{tpu_custom_call.1} parent=1 // pred_region
      _
    $region25: #{tpu_custom_call.1} parent=1 // pred_fallthru
      _
    // Predicated region
    $region26: #{tpu_custom_call.1} parent=1 // pred_check
      _
    $region27: #{tpu_custom_call.1} parent=1 // pred_check_branch
      %29 = sbr.rel (0) target = $region29
    $region28: #{tpu_custom_call.1} parent=1 // pred_region
      %s31 = ssub.s32 8192, 8192
      %32 = vsyncadd [#allocation3], %s31
      %s33 = sshll.u32 [#allocation2], 4
      %s34 = int_to_ptr.vmem [resolvable:$true] %s33
      %39 = dma.hbm_to_vmem [thread:$0]  %s6, 8192, %s34, [#allocation3], 128, 128, 8
    $region29: #{tpu_custom_call.1} parent=1 // pred_fallthru
      _
    // Predicated region
    $region30: #{tpu_custom_call.1} parent=1 // pred_check
      _
    $region31: #{tpu_custom_call.1} parent=1 // pred_check_branch
      %41 = sbr.rel (0) target = $region33
    $region32: #{tpu_custom_call.1} parent=1 // pred_region
      _
    $region33: #{tpu_custom_call.1} parent=1 // pred_fallthru
      _
    // Predicated region
    $region34: #{tpu_custom_call.1} parent=1 // pred_check
      _
    $region35: #{tpu_custom_call.1} parent=1 // pred_check_branch
      %43 = sbr.rel (0) target = $region37
    $region36: #{tpu_custom_call.1} parent=1 // pred_region
      _
    $region37: #{tpu_custom_call.1} parent=1 // pred_fallthru
      _
    // Predicated region
    $region38: #{tpu_custom_call.1} parent=1 // pred_check
      _
    $region39: #{tpu_custom_call.1} parent=1 // pred_check_branch
      %45 = sbr.rel (0) target = $region41
    $region40: #{tpu_custom_call.1} parent=1 // pred_region
      _
    $region41: #{tpu_custom_call.1} parent=1 // pred_fallthru
      _
    // Predicated region
    $region42: #{tpu_custom_call.1} parent=1 // pred_check
      _
    $region43: #{tpu_custom_call.1} parent=1 // pred_check_branch
      %47 = sbr.rel (0) target = $region45
    $region44: #{tpu_custom_call.1} parent=1 // pred_region
      %48 = dma.done [#allocation3], 8192
    $region45: #{tpu_custom_call.1} parent=1 // pred_fallthru
      _
    %v50 = vld [vmem:[%s0] sm:$0xff]
    %v51 = vpack.c.bf16 %v50, %v50
    %v52 = vld [vmem:[%s1] sm:$0xff]
    %v53 = vpack.c.bf16 %v52, %v52
    %v54 = vld [vmem:[%s3] sm:$0xff]
    %v55 = vld [vmem:[%s3 + $0x8] sm:$0xff]
    %v56 = vld [vmem:[%s3 + $0x10] sm:$0xff]
    %v57 = vld [vmem:[%s3 + $0x18] sm:$0xff]
    %v58 = vld [vmem:[%s3 + $0x20] sm:$0xff]
    %v59 = vld [vmem:[%s3 + $0x28] sm:$0xff]
    %v60 = vld [vmem:[%s3 + $0x30] sm:$0x77]
    %v61 = vld [vmem:[%s3 + $0x38] sm:$0x77]
    %v62 = vld [vmem:[%s4] sm:$0xff]
    %v64 = vcombine.high %v62, %v62
    %v66 = vunpack.c.l.s4 1983009808
    %v67 = vunpack.c.0.s8 %v66
    %v68 = vlaneseq
    %v69 = vshrl.u32 %v68, 7
    %v70 = vsub.s32 %v67, %v69
    %v71 = vrot.slane %v62, %v70
    %v73 = vunpack.c.l.s4 1983009808
    %v74 = vunpack.c.0.s8 %v73
    %v75 = vlaneseq
    %v76 = vshrl.u32 %v75, 7
    %v77 = vsub.s32 %v74, %v76
    %v78 = vrot.slane %v64, %v77
    %v79 = vcombine.high %v71, %v71
    %v80 = vcombine.high %v78, %v78
    %vm81 = vcmask 23552
    %v83 = vsel %vm81, %v53, 0
    %vm85 = vcmask 1040384
    %vm86 = vcmask 1041408
    %v87 = vsel %vm85, 4294967295, 65535
    %v88 = vsel %vm86, %v87, 0
    %v90 = vand.u32 %v71, %v88
    %v93 = vand.u32 %v79, %v88
    %v96 = vand.u32 %v78, %v88
    %v99 = vand.u32 %v80, %v88
    %101 = vmatprep.subr.bf16.mxu0 0
    %102 = vmatpush1.bf16.msra.mxu0 0
    %103 = vmatprep.subr.bf16.mxu0 0
    %104 = vmatpush1.bf16.msra.mxu0 0
    %105 = vmatprep.subr.bf16.mxu0 0
    %106 = vmatpush1.bf16.msra.mxu0 0
    %107 = vmatprep.subr.bf16.mxu0 0
    %108 = vmatpush1.bf16.msra.mxu0 0
    %109 = vmatprep.subr.bf16.mxu0 0
    %110 = vmatpush1.bf16.msra.mxu0 0
    %111 = vmatprep.subr.bf16.mxu0 0
    %112 = vmatpush1.bf16.msra.mxu0 0
    %113 = vmatprep.subr.bf16.mxu0 0
    %114 = vmatpush1.bf16.msra.mxu0 0
    %115 = vmatprep.subr.bf16.mxu0 %v93
    %116 = vmatpush1.bf16.msra.mxu0 %v90
    %117 = vmatprep.subr.bf16.mxu0 0
    %118 = vmatpush2.bf16.msra.mxu0 0
    %119 = vmatprep.subr.bf16.mxu0 0
    %120 = vmatpush2.bf16.msra.mxu0 0
    %121 = vmatprep.subr.bf16.mxu0 0
    %122 = vmatpush2.bf16.msra.mxu0 0
    %123 = vmatprep.subr.bf16.mxu0 0
    %124 = vmatpush2.bf16.msra.mxu0 0
    %125 = vmatprep.subr.bf16.mxu0 0
    %126 = vmatpush2.bf16.msra.mxu0 0
    %127 = vmatprep.subr.bf16.mxu0 0
    %128 = vmatpush2.bf16.msra.mxu0 0
    %129 = vmatprep.subr.bf16.mxu0 0
    %130 = vmatpush2.bf16.msra.mxu0 0
    %131 = vmatprep.subr.bf16.mxu0 0
    %132 = vmatpush2.bf16.msra.mxu0 0
    %133 = vmatprep.mubr.bf16.mxu0 0
    %134 = vmatmul.mubr.bf16.gmra.mxu0 %v83
    %v135 = vpop.f32.mrf.mxu0
    %v136 = vadd.f32 0.0, %v135
    %v137 = vpop.f32.mrf.mxu0
    %v138 = vadd.f32 0.0, %v137
    %v139 = vpop.f32.mrf.mxu0
    %v140 = vpop.f32.mrf.mxu0
    %141 = vdwg.mxu0
    %142 = vmatprep.subr.bf16.mxu0 0
    %143 = vmatpush1.bf16.msra.mxu0 0
    %144 = vmatprep.subr.bf16.mxu0 0
    %145 = vmatpush1.bf16.msra.mxu0 0
    %146 = vmatprep.subr.bf16.mxu0 0
    %147 = vmatpush1.bf16.msra.mxu0 0
    %148 = vmatprep.subr.bf16.mxu0 0
    %149 = vmatpush1.bf16.msra.mxu0 0
    %150 = vmatprep.subr.bf16.mxu0 0
    %151 = vmatpush1.bf16.msra.mxu0 0
    %152 = vmatprep.subr.bf16.mxu0 0
    %153 = vmatpush1.bf16.msra.mxu0 0
    %154 = vmatprep.subr.bf16.mxu0 0
    %155 = vmatpush1.bf16.msra.mxu0 0
    %156 = vmatprep.subr.bf16.mxu0 %v99
    %157 = vmatpush1.bf16.msra.mxu0 %v96
    %158 = vmatprep.subr.bf16.mxu0 0
    %159 = vmatpush2.bf16.msra.mxu0 0
    %160 = vmatprep.subr.bf16.mxu0 0
    %161 = vmatpush2.bf16.msra.mxu0 0
    %162 = vmatprep.subr.bf16.mxu0 0
    %163 = vmatpush2.bf16.msra.mxu0 0
    %164 = vmatprep.subr.bf16.mxu0 0
    %165 = vmatpush2.bf16.msra.mxu0 0
    %166 = vmatprep.subr.bf16.mxu0 0
    %167 = vmatpush2.bf16.msra.mxu0 0
    %168 = vmatprep.subr.bf16.mxu0 0
    %169 = vmatpush2.bf16.msra.mxu0 0
    %170 = vmatprep.subr.bf16.mxu0 0
    %171 = vmatpush2.bf16.msra.mxu0 0
    %172 = vmatprep.subr.bf16.mxu0 0
    %173 = vmatpush2.bf16.msra.mxu0 0
    %174 = vmatprep.mubr.bf16.mxu0 0
    %175 = vmatmul.mubr.bf16.gmra.mxu0 %v83
    %v176 = vpop.f32.mrf.mxu0
    %v177 = vadd.f32 0.0, %v176
    %v178 = vpop.f32.mrf.mxu0
    %v179 = vadd.f32 0.0, %v178
    %v180 = vpop.f32.mrf.mxu0
    %v181 = vpop.f32.mrf.mxu0
    %182 = vdwg.mxu0
    %v191 = vunpack.c.l.b16 %v54
    %v192 = vunpack.c.h.b16 %v54
    %v193 = vunpack.c.l.b16 %v55
    %v194 = vunpack.c.h.b16 %v55
    %v195 = vunpack.c.l.b16 %v56
    %v196 = vunpack.c.h.b16 %v56
    %v197 = vunpack.c.l.b16 %v57
    %v198 = vunpack.c.h.b16 %v57
    %v199 = vunpack.c.l.b16 %v58
    %v200 = vunpack.c.h.b16 %v58
    %v201 = vunpack.c.l.b16 %v59
    %v202 = vunpack.c.h.b16 %v59
    %v203 = vunpack.c.l.b16 %v60
    %v204 = vunpack.c.h.b16 %v60
    %v205 = vunpack.c.l.b16 %v61
    %v206 = vunpack.c.h.b16 %v61
    %v207 = vpack.c.b16 %v195, %v191
    %v208 = vpack.c.b16 %v196, %v192
    %v209 = vpack.c.b16 %v197, %v193
    %v210 = vpack.c.b16 %v198, %v194
    %v211 = vpack.c.b16 %v203, %v199
    %v212 = vpack.c.b16 %v204, %v200
    %v213 = vpack.c.b16 %v205, %v201
    %v214 = vpack.c.b16 %v206, %v202
    %vm219 = vcmask 236544
    %v221 = vsel %vm219, %v51, 0
    %vm223 = vcmask 1045504
    %vm224 = vcmask 1046528
    %v225 = vsel %vm223, 4294967295, 65535
    %v226 = vsel %vm224, %v225, 0
    %v228 = vand.u32 %v211, %v226
    %v231 = vand.u32 %v212, %v226
    %v234 = vand.u32 %v213, %v226
    %v237 = vand.u32 %v214, %v226
    %239 = vmatprep.subr.bf16.mxu0 0
    %240 = vmatpush1.bf16.msra.mxu0 0
    %241 = vmatprep.subr.bf16.mxu0 0
    %242 = vmatpush1.bf16.msra.mxu0 0
    %243 = vmatprep.subr.bf16.mxu0 0
    %244 = vmatpush1.bf16.msra.mxu0 0
    %245 = vmatprep.subr.bf16.mxu0 0
    %246 = vmatpush1.bf16.msra.mxu0 0
    %247 = vmatprep.subr.bf16.mxu0 0
    %248 = vmatpush1.bf16.msra.mxu0 0
    %249 = vmatprep.subr.bf16.mxu0 0
    %250 = vmatpush1.bf16.msra.mxu0 0
    %251 = vmatprep.subr.bf16.mxu0 %v231
    %252 = vmatpush1.bf16.msra.mxu0 %v228
    %253 = vmatprep.subr.bf16.mxu0 %v208
    %254 = vmatpush1.bf16.msra.mxu0 %v207
    %255 = vmatprep.subr.bf16.mxu0 0
    %256 = vmatpush2.bf16.msra.mxu0 0
    %257 = vmatprep.subr.bf16.mxu0 0
    %258 = vmatpush2.bf16.msra.mxu0 0
    %259 = vmatprep.subr.bf16.mxu0 0
    %260 = vmatpush2.bf16.msra.mxu0 0
    %261 = vmatprep.subr.bf16.mxu0 0
    %262 = vmatpush2.bf16.msra.mxu0 0
    %263 = vmatprep.subr.bf16.mxu0 0
    %264 = vmatpush2.bf16.msra.mxu0 0
    %265 = vmatprep.subr.bf16.mxu0 0
    %266 = vmatpush2.bf16.msra.mxu0 0
    %267 = vmatprep.subr.bf16.mxu0 0
    %268 = vmatpush2.bf16.msra.mxu0 0
    %269 = vmatprep.subr.bf16.mxu0 0
    %270 = vmatpush2.bf16.msra.mxu0 0
    %271 = vmatprep.mubr.bf16.mxu0 0
    %272 = vmatmul.mubr.bf16.gmra.mxu0 %v221
    %v273 = vpop.f32.mrf.mxu0
    %v274 = vadd.f32 %v136, %v273
    %v275 = vpop.f32.mrf.mxu0
    %v276 = vadd.f32 %v138, %v275
    %v277 = vpop.f32.mrf.mxu0
    %v278 = vpop.f32.mrf.mxu0
    %279 = vdwg.mxu0
    %280 = vmatprep.subr.bf16.mxu0 0
    %281 = vmatpush1.bf16.msra.mxu0 0
    %282 = vmatprep.subr.bf16.mxu0 0
    %283 = vmatpush1.bf16.msra.mxu0 0
    %284 = vmatprep.subr.bf16.mxu0 0
    %285 = vmatpush1.bf16.msra.mxu0 0
    %286 = vmatprep.subr.bf16.mxu0 0
    %287 = vmatpush1.bf16.msra.mxu0 0
    %288 = vmatprep.subr.bf16.mxu0 0
    %289 = vmatpush1.bf16.msra.mxu0 0
    %290 = vmatprep.subr.bf16.mxu0 0
    %291 = vmatpush1.bf16.msra.mxu0 0
    %292 = vmatprep.subr.bf16.mxu0 %v237
    %293 = vmatpush1.bf16.msra.mxu0 %v234
    %294 = vmatprep.subr.bf16.mxu0 %v210
    %295 = vmatpush1.bf16.msra.mxu0 %v209
    %296 = vmatprep.subr.bf16.mxu0 0
    %297 = vmatpush2.bf16.msra.mxu0 0
    %298 = vmatprep.subr.bf16.mxu0 0
    %299 = vmatpush2.bf16.msra.mxu0 0
    %300 = vmatprep.subr.bf16.mxu0 0
    %301 = vmatpush2.bf16.msra.mxu0 0
    %302 = vmatprep.subr.bf16.mxu0 0
    %303 = vmatpush2.bf16.msra.mxu0 0
    %304 = vmatprep.subr.bf16.mxu0 0
    %305 = vmatpush2.bf16.msra.mxu0 0
    %306 = vmatprep.subr.bf16.mxu0 0
    %307 = vmatpush2.bf16.msra.mxu0 0
    %308 = vmatprep.subr.bf16.mxu0 0
    %309 = vmatpush2.bf16.msra.mxu0 0
    %310 = vmatprep.subr.bf16.mxu0 0
    %311 = vmatpush2.bf16.msra.mxu0 0
    %312 = vmatprep.mubr.bf16.mxu0 0
    %313 = vmatmul.mubr.bf16.gmra.mxu0 %v221
    %v314 = vpop.f32.mrf.mxu0
    %v315 = vadd.f32 %v177, %v314
    %v316 = vpop.f32.mrf.mxu0
    %v317 = vadd.f32 %v179, %v316
    %v318 = vpop.f32.mrf.mxu0
    %v319 = vpop.f32.mrf.mxu0
    %320 = vdwg.mxu0
    %v321 = vld [vmem:[%s5] sm:$0xf]
    %v323 = vlaneseq
    %v324 = vshrl.u32 %v323, 7
    %v325 = vsub.s32 0, %v324
    %v326 = vrot.slane %v321, %v325
    %v327 = vlaneseq
    %v328 = vshrl.u32 %v327, 7
    %v329 = vsub.s32 1, %v328
    %v330 = vrot.slane %v321, %v329
    %v331 = vlaneseq
    %v332 = vshrl.u32 %v331, 7
    %v333 = vsub.s32 2, %v332
    %v334 = vrot.slane %v321, %v333
    %v335 = vlaneseq
    %v336 = vshrl.u32 %v335, 7
    %v337 = vsub.s32 3, %v336
    %v338 = vrot.slane %v321, %v337
    %v343 = vadd.f32 %v274, %v326
    %v344 = vadd.f32 %v276, %v330
    %v345 = vadd.f32 %v315, %v334
    %v346 = vadd.f32 %v317, %v338
    %v347 = vmax.f32 %v343, 0.0
    %v348 = vmax.f32 %v344, 0.0
    %v349 = vmax.f32 %v345, 0.0
    %v350 = vmax.f32 %v346, 0.0
    %v351 = vpack.c.bf16 %v347, %v347
    %v352 = vpack.c.bf16 %v348, %v348
    %v353 = vpack.c.bf16 %v349, %v349
    %v354 = vpack.c.bf16 %v350, %v350
    %v355 = vld [vmem:[#allocation2] sm:$0xff]
    %v356 = vld [vmem:[#allocation2 + $0x8] sm:$0xff]
    %v357 = vld [vmem:[#allocation2 + $0x10] sm:$0xff]
    %v358 = vld [vmem:[#allocation2 + $0x18] sm:$0xff]
    %v359 = vld [vmem:[#allocation2 + $0x20] sm:$0xff]
    %v360 = vld [vmem:[#allocation2 + $0x28] sm:$0xff]
    %v361 = vld [vmem:[#allocation2 + $0x30] sm:$0xff]
    %v362 = vld [vmem:[#allocation2 + $0x38] sm:$0xff]
    %v363 = vld [vmem:[#allocation2 + $0x40] sm:$0xff]
    %v364 = vld [vmem:[#allocation2 + $0x48] sm:$0xff]
    %v365 = vld [vmem:[#allocation2 + $0x50] sm:$0xff]
    %v366 = vld [vmem:[#allocation2 + $0x58] sm:$0xff]
    %v367 = vld [vmem:[#allocation2 + $0x60] sm:$0xff]
    %v368 = vld [vmem:[#allocation2 + $0x68] sm:$0xff]
    %v369 = vld [vmem:[#allocation2 + $0x70] sm:$0xff]
    %v370 = vld [vmem:[#allocation2 + $0x78] sm:$0xff]
    %v371 = vld [vmem:[#allocation2 + $0x80] sm:$0xff]
    %v372 = vld [vmem:[#allocation2 + $0x88] sm:$0xff]
    %v373 = vld [vmem:[#allocation2 + $0x90] sm:$0xff]
    %v374 = vld [vmem:[#allocation2 + $0x98] sm:$0xff]
    %v375 = vld [vmem:[#allocation2 + $0xa0] sm:$0xff]
    %v376 = vld [vmem:[#allocation2 + $0xa8] sm:$0xff]
    %v377 = vld [vmem:[#allocation2 + $0xb0] sm:$0xff]
    %v378 = vld [vmem:[#allocation2 + $0xb8] sm:$0xff]
    %v379 = vld [vmem:[#allocation2 + $0xc0] sm:$0xff]
    %v380 = vld [vmem:[#allocation2 + $0xc8] sm:$0xff]
    %v381 = vld [vmem:[#allocation2 + $0xd0] sm:$0xff]
    %v382 = vld [vmem:[#allocation2 + $0xd8] sm:$0xff]
    %v383 = vld [vmem:[#allocation2 + $0xe0] sm:$0xff]
    %v384 = vld [vmem:[#allocation2 + $0xe8] sm:$0xff]
    %v385 = vld [vmem:[#allocation2 + $0xf0] sm:$0xff]
    %v386 = vld [vmem:[#allocation2 + $0xf8] sm:$0xff]
    %v387 = vld [vmem:[#allocation2 + $0x100] sm:$0xff]
    %v388 = vld [vmem:[#allocation2 + $0x108] sm:$0xff]
    %v389 = vld [vmem:[#allocation2 + $0x110] sm:$0xff]
    %v390 = vld [vmem:[#allocation2 + $0x118] sm:$0xff]
    %v391 = vld [vmem:[#allocation2 + $0x120] sm:$0xff]
    %v392 = vld [vmem:[#allocation2 + $0x128] sm:$0xff]
    %v393 = vld [vmem:[#allocation2 + $0x130] sm:$0xff]
    %v394 = vld [vmem:[#allocation2 + $0x138] sm:$0xff]
    %v395 = vld [vmem:[#allocation2 + $0x140] sm:$0xff]
    %v396 = vld [vmem:[#allocation2 + $0x148] sm:$0xff]
    %v397 = vld [vmem:[#allocation2 + $0x150] sm:$0xff]
    %v398 = vld [vmem:[#allocation2 + $0x158] sm:$0xff]
    %v399 = vld [vmem:[#allocation2 + $0x160] sm:$0xff]
    %v400 = vld [vmem:[#allocation2 + $0x168] sm:$0xff]
    %v401 = vld [vmem:[#allocation2 + $0x170] sm:$0xff]
    %v402 = vld [vmem:[#allocation2 + $0x178] sm:$0xff]
    %v403 = vld [vmem:[#allocation2 + $0x180] sm:$0xff]
    %v404 = vld [vmem:[#allocation2 + $0x188] sm:$0xff]
    %v405 = vld [vmem:[#allocation2 + $0x190] sm:$0xff]
    %v406 = vld [vmem:[#allocation2 + $0x198] sm:$0xff]
    %v407 = vld [vmem:[#allocation2 + $0x1a0] sm:$0xff]
    %v408 = vld [vmem:[#allocation2 + $0x1a8] sm:$0xff]
    %v409 = vld [vmem:[#allocation2 + $0x1b0] sm:$0xff]
    %v410 = vld [vmem:[#allocation2 + $0x1b8] sm:$0xff]
    %v411 = vld [vmem:[#allocation2 + $0x1c0] sm:$0xff]
    %v412 = vld [vmem:[#allocation2 + $0x1c8] sm:$0xff]
    %v413 = vld [vmem:[#allocation2 + $0x1d0] sm:$0xff]
    %v414 = vld [vmem:[#allocation2 + $0x1d8] sm:$0xff]
    %v415 = vld [vmem:[#allocation2 + $0x1e0] sm:$0xff]
    %v416 = vld [vmem:[#allocation2 + $0x1e8] sm:$0xff]
    %v417 = vld [vmem:[#allocation2 + $0x1f0] sm:$0xff]
    %v418 = vld [vmem:[#allocation2 + $0x1f8] sm:$0xff]
    %v419 = vld [vmem:[%s7] sm:$0x3]
    %v421 = vlaneseq
    %v422 = vshrl.u32 %v421, 7
    %v423 = vsub.s32 0, %v422
    %v424 = vrot.slane %v419, %v423
    %v425 = vlaneseq
    %v426 = vshrl.u32 %v425, 7
    %v427 = vsub.s32 1, %v426
    %v428 = vrot.slane %v419, %v427
    %v495 = vunpack.c.l.b16 %v355
    %v496 = vunpack.c.h.b16 %v355
    %v497 = vunpack.c.l.b16 %v356
    %v498 = vunpack.c.h.b16 %v356
    %v499 = vunpack.c.l.b16 %v357
    %v500 = vunpack.c.h.b16 %v357
    %v501 = vunpack.c.l.b16 %v358
    %v502 = vunpack.c.h.b16 %v358
    %v503 = vunpack.c.l.b16 %v359
    %v504 = vunpack.c.h.b16 %v359
    %v505 = vunpack.c.l.b16 %v360
    %v506 = vunpack.c.h.b16 %v360
    %v507 = vunpack.c.l.b16 %v361
    %v508 = vunpack.c.h.b16 %v361
    %v509 = vunpack.c.l.b16 %v362
    %v510 = vunpack.c.h.b16 %v362
    %v511 = vunpack.c.l.b16 %v363
    %v512 = vunpack.c.h.b16 %v363
    %v513 = vunpack.c.l.b16 %v364
    %v514 = vunpack.c.h.b16 %v364
    %v515 = vunpack.c.l.b16 %v365
    %v516 = vunpack.c.h.b16 %v365
    %v517 = vunpack.c.l.b16 %v366
    %v518 = vunpack.c.h.b16 %v366
    %v519 = vunpack.c.l.b16 %v367
    %v520 = vunpack.c.h.b16 %v367
    %v521 = vunpack.c.l.b16 %v368
    %v522 = vunpack.c.h.b16 %v368
    %v523 = vunpack.c.l.b16 %v369
    %v524 = vunpack.c.h.b16 %v369
    %v525 = vunpack.c.l.b16 %v370
    %v526 = vunpack.c.h.b16 %v370
    %v527 = vunpack.c.l.b16 %v371
    %v528 = vunpack.c.h.b16 %v371
    %v529 = vunpack.c.l.b16 %v372
    %v530 = vunpack.c.h.b16 %v372
    %v531 = vunpack.c.l.b16 %v373
    %v532 = vunpack.c.h.b16 %v373
    %v533 = vunpack.c.l.b16 %v374
    %v534 = vunpack.c.h.b16 %v374
    %v535 = vunpack.c.l.b16 %v375
    %v536 = vunpack.c.h.b16 %v375
    %v537 = vunpack.c.l.b16 %v376
    %v538 = vunpack.c.h.b16 %v376
    %v539 = vunpack.c.l.b16 %v377
    %v540 = vunpack.c.h.b16 %v377
    %v541 = vunpack.c.l.b16 %v378
    %v542 = vunpack.c.h.b16 %v378
    %v543 = vunpack.c.l.b16 %v379
    %v544 = vunpack.c.h.b16 %v379
    %v545 = vunpack.c.l.b16 %v380
    %v546 = vunpack.c.h.b16 %v380
    %v547 = vunpack.c.l.b16 %v381
    %v548 = vunpack.c.h.b16 %v381
    %v549 = vunpack.c.l.b16 %v382
    %v550 = vunpack.c.h.b16 %v382
    %v551 = vunpack.c.l.b16 %v383
    %v552 = vunpack.c.h.b16 %v383
    %v553 = vunpack.c.l.b16 %v384
    %v554 = vunpack.c.h.b16 %v384
    %v555 = vunpack.c.l.b16 %v385
    %v556 = vunpack.c.h.b16 %v385
    %v557 = vunpack.c.l.b16 %v386
    %v558 = vunpack.c.h.b16 %v386
    %v559 = vunpack.c.l.b16 %v387
    %v560 = vunpack.c.h.b16 %v387
    %v561 = vunpack.c.l.b16 %v388
    %v562 = vunpack.c.h.b16 %v388
    %v563 = vunpack.c.l.b16 %v389
    %v564 = vunpack.c.h.b16 %v389
    %v565 = vunpack.c.l.b16 %v390
    %v566 = vunpack.c.h.b16 %v390
    %v567 = vunpack.c.l.b16 %v391
    %v568 = vunpack.c.h.b16 %v391
    %v569 = vunpack.c.l.b16 %v392
    %v570 = vunpack.c.h.b16 %v392
    %v571 = vunpack.c.l.b16 %v393
    %v572 = vunpack.c.h.b16 %v393
    %v573 = vunpack.c.l.b16 %v394
    %v574 = vunpack.c.h.b16 %v394
    %v575 = vunpack.c.l.b16 %v395
    %v576 = vunpack.c.h.b16 %v395
    %v577 = vunpack.c.l.b16 %v396
    %v578 = vunpack.c.h.b16 %v396
    %v579 = vunpack.c.l.b16 %v397
    %v580 = vunpack.c.h.b16 %v397
    %v581 = vunpack.c.l.b16 %v398
    %v582 = vunpack.c.h.b16 %v398
    %v583 = vunpack.c.l.b16 %v399
    %v584 = vunpack.c.h.b16 %v399
    %v585 = vunpack.c.l.b16 %v400
    %v586 = vunpack.c.h.b16 %v400
    %v587 = vunpack.c.l.b16 %v401
    %v588 = vunpack.c.h.b16 %v401
    %v589 = vunpack.c.l.b16 %v402
    %v590 = vunpack.c.h.b16 %v402
    %v591 = vunpack.c.l.b16 %v403
    %v592 = vunpack.c.h.b16 %v403
    %v593 = vunpack.c.l.b16 %v404
    %v594 = vunpack.c.h.b16 %v404
    %v595 = vunpack.c.l.b16 %v405
    %v596 = vunpack.c.h.b16 %v405
    %v597 = vunpack.c.l.b16 %v406
    %v598 = vunpack.c.h.b16 %v406
    %v599 = vunpack.c.l.b16 %v407
    %v600 = vunpack.c.h.b16 %v407
    %v601 = vunpack.c.l.b16 %v408
    %v602 = vunpack.c.h.b16 %v408
    %v603 = vunpack.c.l.b16 %v409
    %v604 = vunpack.c.h.b16 %v409
    %v605 = vunpack.c.l.b16 %v410
    %v606 = vunpack.c.h.b16 %v410
    %v607 = vunpack.c.l.b16 %v411
    %v608 = vunpack.c.h.b16 %v411
    %v609 = vunpack.c.l.b16 %v412
    %v610 = vunpack.c.h.b16 %v412
    %v611 = vunpack.c.l.b16 %v413
    %v612 = vunpack.c.h.b16 %v413
    %v613 = vunpack.c.l.b16 %v414
    %v614 = vunpack.c.h.b16 %v414
    %v615 = vunpack.c.l.b16 %v415
    %v616 = vunpack.c.h.b16 %v415
    %v617 = vunpack.c.l.b16 %v416
    %v618 = vunpack.c.h.b16 %v416
    %v619 = vunpack.c.l.b16 %v417
    %v620 = vunpack.c.h.b16 %v417
    %v621 = vunpack.c.l.b16 %v418
    %v622 = vunpack.c.h.b16 %v418
    %v623 = vpack.c.b16 %v497, %v495
    %v624 = vpack.c.b16 %v498, %v496
    %v625 = vpack.c.b16 %v501, %v499
    %v626 = vpack.c.b16 %v502, %v500
    %v627 = vpack.c.b16 %v505, %v503
    %v628 = vpack.c.b16 %v506, %v504
    %v629 = vpack.c.b16 %v509, %v507
    %v630 = vpack.c.b16 %v510, %v508
    %v631 = vpack.c.b16 %v513, %v511
    %v632 = vpack.c.b16 %v514, %v512
    %v633 = vpack.c.b16 %v517, %v515
    %v634 = vpack.c.b16 %v518, %v516
    %v635 = vpack.c.b16 %v521, %v519
    %v636 = vpack.c.b16 %v522, %v520
    %v637 = vpack.c.b16 %v525, %v523
    %v638 = vpack.c.b16 %v526, %v524
    %v639 = vpack.c.b16 %v529, %v527
    %v640 = vpack.c.b16 %v530, %v528
    %v641 = vpack.c.b16 %v533, %v531
    %v642 = vpack.c.b16 %v534, %v532
    %v643 = vpack.c.b16 %v537, %v535
    %v644 = vpack.c.b16 %v538, %v536
    %v645 = vpack.c.b16 %v541, %v539
    %v646 = vpack.c.b16 %v542, %v540
    %v647 = vpack.c.b16 %v545, %v543
    %v648 = vpack.c.b16 %v546, %v544
    %v649 = vpack.c.b16 %v549, %v547
    %v650 = vpack.c.b16 %v550, %v548
    %v651 = vpack.c.b16 %v553, %v551
    %v652 = vpack.c.b16 %v554, %v552
    %v653 = vpack.c.b16 %v557, %v555
    %v654 = vpack.c.b16 %v558, %v556
    %v655 = vpack.c.b16 %v561, %v559
    %v656 = vpack.c.b16 %v562, %v560
    %v657 = vpack.c.b16 %v565, %v563
    %v658 = vpack.c.b16 %v566, %v564
    %v659 = vpack.c.b16 %v569, %v567
    %v660 = vpack.c.b16 %v570, %v568
    %v661 = vpack.c.b16 %v573, %v571
    %v662 = vpack.c.b16 %v574, %v572
    %v663 = vpack.c.b16 %v577, %v575
    %v664 = vpack.c.b16 %v578, %v576
    %v665 = vpack.c.b16 %v581, %v579
    %v666 = vpack.c.b16 %v582, %v580
    %v667 = vpack.c.b16 %v585, %v583
    %v668 = vpack.c.b16 %v586, %v584
    %v669 = vpack.c.b16 %v589, %v587
    %v670 = vpack.c.b16 %v590, %v588
    %v671 = vpack.c.b16 %v593, %v591
    %v672 = vpack.c.b16 %v594, %v592
    %v673 = vpack.c.b16 %v597, %v595
    %v674 = vpack.c.b16 %v598, %v596
    %v675 = vpack.c.b16 %v601, %v599
    %v676 = vpack.c.b16 %v602, %v600
    %v677 = vpack.c.b16 %v605, %v603
    %v678 = vpack.c.b16 %v606, %v604
    %v679 = vpack.c.b16 %v609, %v607
    %v680 = vpack.c.b16 %v610, %v608
    %v681 = vpack.c.b16 %v613, %v611
    %v682 = vpack.c.b16 %v614, %v612
    %v683 = vpack.c.b16 %v617, %v615
    %v684 = vpack.c.b16 %v618, %v616
    %v685 = vpack.c.b16 %v621, %v619
    %v686 = vpack.c.b16 %v622, %v620
    %751 = vmatprep.subr.bf16.mxu0 %v638
    %752 = vmatpush1.bf16.msra.mxu0 %v637
    %753 = vmatprep.subr.bf16.mxu0 %v636
    %754 = vmatpush1.bf16.msra.mxu0 %v635
    %755 = vmatprep.subr.bf16.mxu0 %v634
    %756 = vmatpush1.bf16.msra.mxu0 %v633
    %757 = vmatprep.subr.bf16.mxu0 %v632
    %758 = vmatpush1.bf16.msra.mxu0 %v631
    %759 = vmatprep.subr.bf16.mxu0 %v630
    %760 = vmatpush1.bf16.msra.mxu0 %v629
    %761 = vmatprep.subr.bf16.mxu0 %v628
    %762 = vmatpush1.bf16.msra.mxu0 %v627
    %763 = vmatprep.subr.bf16.mxu0 %v626
    %764 = vmatpush1.bf16.msra.mxu0 %v625
    %765 = vmatprep.subr.bf16.mxu0 %v624
    %766 = vmatpush1.bf16.msra.mxu0 %v623
    %767 = vmatprep.subr.bf16.mxu0 %v654
    %768 = vmatpush2.bf16.msra.mxu0 %v653
    %769 = vmatprep.subr.bf16.mxu0 %v652
    %770 = vmatpush2.bf16.msra.mxu0 %v651
    %771 = vmatprep.subr.bf16.mxu0 %v650
    %772 = vmatpush2.bf16.msra.mxu0 %v649
    %773 = vmatprep.subr.bf16.mxu0 %v648
    %774 = vmatpush2.bf16.msra.mxu0 %v647
    %775 = vmatprep.subr.bf16.mxu0 %v646
    %776 = vmatpush2.bf16.msra.mxu0 %v645
    %777 = vmatprep.subr.bf16.mxu0 %v644
    %778 = vmatpush2.bf16.msra.mxu0 %v643
    %779 = vmatprep.subr.bf16.mxu0 %v642
    %780 = vmatpush2.bf16.msra.mxu0 %v641
    %781 = vmatprep.subr.bf16.mxu0 %v640
    %782 = vmatpush2.bf16.msra.mxu0 %v639
    %783 = vmatprep.mubr.bf16.mxu0 %v352
    %784 = vmatmul.mubr.bf16.gmra.mxu0 %v351
    %v785 = vpop.f32.mrf.mxu0
    %v786 = vadd.f32 %v424, %v785
    %v787 = vpop.f32.mrf.mxu0
    %v788 = vadd.f32 %v428, %v787
    %v789 = vpop.f32.mrf.mxu0
    %v790 = vpop.f32.mrf.mxu0
    %791 = vdwg.mxu0
    %792 = vmatprep.subr.bf16.mxu0 %v670
    %793 = vmatpush1.bf16.msra.mxu0 %v669
    %794 = vmatprep.subr.bf16.mxu0 %v668
    %795 = vmatpush1.bf16.msra.mxu0 %v667
    %796 = vmatprep.subr.bf16.mxu0 %v666
    %797 = vmatpush1.bf16.msra.mxu0 %v665
    %798 = vmatprep.subr.bf16.mxu0 %v664
    %799 = vmatpush1.bf16.msra.mxu0 %v663
    %800 = vmatprep.subr.bf16.mxu0 %v662
    %801 = vmatpush1.bf16.msra.mxu0 %v661
    %802 = vmatprep.subr.bf16.mxu0 %v660
    %803 = vmatpush1.bf16.msra.mxu0 %v659
    %804 = vmatprep.subr.bf16.mxu0 %v658
    %805 = vmatpush1.bf16.msra.mxu0 %v657
    %806 = vmatprep.subr.bf16.mxu0 %v656
    %807 = vmatpush1.bf16.msra.mxu0 %v655
    %808 = vmatprep.subr.bf16.mxu0 %v686
    %809 = vmatpush2.bf16.msra.mxu0 %v685
    %810 = vmatprep.subr.bf16.mxu0 %v684
    %811 = vmatpush2.bf16.msra.mxu0 %v683
    %812 = vmatprep.subr.bf16.mxu0 %v682
    %813 = vmatpush2.bf16.msra.mxu0 %v681
    %814 = vmatprep.subr.bf16.mxu0 %v680
    %815 = vmatpush2.bf16.msra.mxu0 %v679
    %816 = vmatprep.subr.bf16.mxu0 %v678
    %817 = vmatpush2.bf16.msra.mxu0 %v677
    %818 = vmatprep.subr.bf16.mxu0 %v676
    %819 = vmatpush2.bf16.msra.mxu0 %v675
    %820 = vmatprep.subr.bf16.mxu0 %v674
    %821 = vmatpush2.bf16.msra.mxu0 %v673
    %822 = vmatprep.subr.bf16.mxu0 %v672
    %823 = vmatpush2.bf16.msra.mxu0 %v671
    %824 = vmatprep.mubr.bf16.mxu0 %v354
    %825 = vmatmul.mubr.bf16.gmra.mxu0 %v353
    %v826 = vpop.f32.mrf.mxu0
    %v827 = vadd.f32 %v786, %v826
    %v828 = vpop.f32.mrf.mxu0
    %v829 = vadd.f32 %v788, %v828
    %v830 = vpop.f32.mrf.mxu0
    %v831 = vpop.f32.mrf.mxu0
    %832 = vdwg.mxu0
    %v833 = vmax.f32 %v827, 0.0
    %v834 = vmax.f32 %v829, 0.0
    %v835 = vpack.c.bf16 %v833, %v833
    %v836 = vpack.c.bf16 %v834, %v834
    %v837 = vld [vmem:[%s8] sm:$0xf]
    %v838 = vld [vmem:[%s8 + $0x4] sm:$0xf]
    %v839 = vld [vmem:[%s8 + $0x8] sm:$0xf]
    %v840 = vld [vmem:[%s8 + $0xc] sm:$0xf]
    %v841 = vld [vmem:[%s8 + $0x10] sm:$0xf]
    %v842 = vld [vmem:[%s8 + $0x14] sm:$0xf]
    %v843 = vld [vmem:[%s8 + $0x18] sm:$0xf]
    %v844 = vld [vmem:[%s8 + $0x1c] sm:$0xf]
    %v845 = vld [vmem:[%s8 + $0x20] sm:$0xf]
    %v846 = vld [vmem:[%s8 + $0x24] sm:$0xf]
    %v847 = vld [vmem:[%s8 + $0x28] sm:$0xf]
    %v848 = vld [vmem:[%s8 + $0x2c] sm:$0xf]
    %v849 = vld [vmem:[%s8 + $0x30] sm:$0xf]
    %v850 = vld [vmem:[%s8 + $0x34] sm:$0xf]
    %v851 = vld [vmem:[%s8 + $0x38] sm:$0xf]
    %v852 = vld [vmem:[%s8 + $0x3c] sm:$0xf]
    %v853 = vld [vmem:[%s8 + $0x40] sm:$0xf]
    %v854 = vld [vmem:[%s8 + $0x44] sm:$0xf]
    %v855 = vld [vmem:[%s8 + $0x48] sm:$0xf]
    %v856 = vld [vmem:[%s8 + $0x4c] sm:$0xf]
    %v857 = vld [vmem:[%s8 + $0x50] sm:$0xf]
    %v858 = vld [vmem:[%s8 + $0x54] sm:$0xf]
    %v859 = vld [vmem:[%s8 + $0x58] sm:$0xf]
    %v860 = vld [vmem:[%s8 + $0x5c] sm:$0xf]
    %v861 = vld [vmem:[%s8 + $0x60] sm:$0xf]
    %v862 = vld [vmem:[%s8 + $0x64] sm:$0xf]
    %v863 = vld [vmem:[%s8 + $0x68] sm:$0xf]
    %v864 = vld [vmem:[%s8 + $0x6c] sm:$0xf]
    %v865 = vld [vmem:[%s8 + $0x70] sm:$0xf]
    %v866 = vld [vmem:[%s8 + $0x74] sm:$0xf]
    %v867 = vld [vmem:[%s8 + $0x78] sm:$0xf]
    %v868 = vld [vmem:[%s8 + $0x7c] sm:$0xf]
    %v869 = vld [vmem:[%s9] sm:$0x1]
    %v871 = vlaneseq
    %v872 = vshrl.u32 %v871, 7
    %v873 = vsub.s32 0, %v872
    %v874 = vrot.slane %v869, %v873
    %v908 = vunpack.c.l.b16 %v837
    %v909 = vunpack.c.l.b16 %v838
    %v910 = vunpack.c.l.b16 %v839
    %v911 = vunpack.c.l.b16 %v840
    %v912 = vunpack.c.l.b16 %v841
    %v913 = vunpack.c.l.b16 %v842
    %v914 = vunpack.c.l.b16 %v843
    %v915 = vunpack.c.l.b16 %v844
    %v916 = vunpack.c.l.b16 %v845
    %v917 = vunpack.c.l.b16 %v846
    %v918 = vunpack.c.l.b16 %v847
    %v919 = vunpack.c.l.b16 %v848
    %v920 = vunpack.c.l.b16 %v849
    %v921 = vunpack.c.l.b16 %v850
    %v922 = vunpack.c.l.b16 %v851
    %v923 = vunpack.c.l.b16 %v852
    %v924 = vunpack.c.l.b16 %v853
    %v925 = vunpack.c.l.b16 %v854
    %v926 = vunpack.c.l.b16 %v855
    %v927 = vunpack.c.l.b16 %v856
    %v928 = vunpack.c.l.b16 %v857
    %v929 = vunpack.c.l.b16 %v858
    %v930 = vunpack.c.l.b16 %v859
    %v931 = vunpack.c.l.b16 %v860
    %v932 = vunpack.c.l.b16 %v861
    %v933 = vunpack.c.l.b16 %v862
    %v934 = vunpack.c.l.b16 %v863
    %v935 = vunpack.c.l.b16 %v864
    %v936 = vunpack.c.l.b16 %v865
    %v937 = vunpack.c.l.b16 %v866
    %v938 = vunpack.c.l.b16 %v867
    %v939 = vunpack.c.l.b16 %v868
    %v940 = vpack.c.b16 %v909, %v908
    %v941 = vpack.c.b16 %v911, %v910
    %v942 = vpack.c.b16 %v913, %v912
    %v943 = vpack.c.b16 %v915, %v914
    %v944 = vpack.c.b16 %v917, %v916
    %v945 = vpack.c.b16 %v919, %v918
    %v946 = vpack.c.b16 %v921, %v920
    %v947 = vpack.c.b16 %v923, %v922
    %v948 = vpack.c.b16 %v925, %v924
    %v949 = vpack.c.b16 %v927, %v926
    %v950 = vpack.c.b16 %v929, %v928
    %v951 = vpack.c.b16 %v931, %v930
    %v952 = vpack.c.b16 %v933, %v932
    %v953 = vpack.c.b16 %v935, %v934
    %v954 = vpack.c.b16 %v937, %v936
    %v955 = vpack.c.b16 %v939, %v938
    %972 = vmatprep.subr.bf16.mxu0 0
    %973 = vmatpush1.bf16.msra.mxu0 %v947
    %974 = vmatprep.subr.bf16.mxu0 0
    %975 = vmatpush1.bf16.msra.mxu0 %v946
    %976 = vmatprep.subr.bf16.mxu0 0
    %977 = vmatpush1.bf16.msra.mxu0 %v945
    %978 = vmatprep.subr.bf16.mxu0 0
    %979 = vmatpush1.bf16.msra.mxu0 %v944
    %980 = vmatprep.subr.bf16.mxu0 0
    %981 = vmatpush1.bf16.msra.mxu0 %v943
    %982 = vmatprep.subr.bf16.mxu0 0
    %983 = vmatpush1.bf16.msra.mxu0 %v942
    %984 = vmatprep.subr.bf16.mxu0 0
    %985 = vmatpush1.bf16.msra.mxu0 %v941
    %986 = vmatprep.subr.bf16.mxu0 0
    %987 = vmatpush1.bf16.msra.mxu0 %v940
    %988 = vmatprep.subr.bf16.mxu0 0
    %989 = vmatpush2.bf16.msra.mxu0 %v955
    %990 = vmatprep.subr.bf16.mxu0 0
    %991 = vmatpush2.bf16.msra.mxu0 %v954
    %992 = vmatprep.subr.bf16.mxu0 0
    %993 = vmatpush2.bf16.msra.mxu0 %v953
    %994 = vmatprep.subr.bf16.mxu0 0
    %995 = vmatpush2.bf16.msra.mxu0 %v952
    %996 = vmatprep.subr.bf16.mxu0 0
    %997 = vmatpush2.bf16.msra.mxu0 %v951
    %998 = vmatprep.subr.bf16.mxu0 0
    %999 = vmatpush2.bf16.msra.mxu0 %v950
    %1000 = vmatprep.subr.bf16.mxu0 0
    %1001 = vmatpush2.bf16.msra.mxu0 %v949
    %1002 = vmatprep.subr.bf16.mxu0 0
    %1003 = vmatpush2.bf16.msra.mxu0 %v948
    %1004 = vmatprep.mubr.bf16.mxu0 %v836
    %1005 = vmatmul.mubr.bf16.gmra.mxu0 %v835
    %v1006 = vpop.f32.mrf.mxu0
    %v1007 = vadd.f32 %v874, %v1006
    %v1008 = vpop.f32.mrf.mxu0
    %v1009 = vpop.f32.mrf.mxu0
    %v1010 = vpop.f32.mrf.mxu0
    %1011 = vdwg.mxu0
    %v1012 = vld [vmem:[%s2] sm:$0xff]
    %vm1013 = vcmp.eq.f32.partialorder %v1012, 0.0
    %v1014 = vsel %vm1013, -1e+30, %v1007
    %v1015 = vsel %vm81, %v1014, -inf
    %1016 = vmax.xlane.f32.xlu0 %v1015
    %v1017 = vpop.xlane.xlu0 %1016
    %v1018 = vsub.f32 %v1014, %v1017
    %v1019 = vmul.f32 %v1018, 1.442695
    %v1020 = vpow.pop %v1019
    %v1021 = vsel %vm81, %v1020, 0.0
    %1022 = vadd.xlane.f32.xlu0 %v1021
    %v1023 = vpop.xlane.xlu0 %1022
    %v1024 = vrcp.pop %v1023
    %v1025 = vmul.f32 %v1020, %v1024
    %1026 = vst.msk [vmem:[%s10] sm:$0xff] %vm81, %v1025
    // Predicated region
    $region46: #{tpu_custom_call.1} parent=1 // pred_check
      _
    $region47: #{tpu_custom_call.1} parent=1 // pred_check_branch
      %1028 = sbr.rel (0) target = $region49
    $region48: #{tpu_custom_call.1} parent=1 // pred_region
      _
    $region49: #{tpu_custom_call.1} parent=1 // pred_fallthru
      _
    // Predicated region
    $region50: #{tpu_custom_call.1} parent=1 // pred_check
      _
    $region51: #{tpu_custom_call.1} parent=1 // pred_check_branch
      %1030 = sbr.rel (0) target = $region53
    $region52: #{tpu_custom_call.1} parent=1 // pred_region
      _
    $region53: #{tpu_custom_call.1} parent=1 // pred_fallthru
      _
    %1031 = vsyncpa [#allocation3], 1

</llo_original>
